<compile_context>
chip_gen: v7x
topology: tpu7x:2x2x1
jax: 0.10.0
libtpu: 0.0.40
codegen_flags: <defaults>
</compile_context>

<pallas_src>
import math
import jax
import jax.numpy as jnp
from jax.experimental import pallas as pl
from jax.experimental.pallas import tpu as pltpu


def _round_up(x, n):
    return ((x + n - 1) // n) * n


def _num_tensorcores():
    """2 TensorCores per chip on v7x, 1 on v5e/v6e (used only to decide
    whether to force >=2 grid steps)."""
    try:
        kind = jax.devices()[0].device_kind.lower()
    except Exception:
        return 1
    return 2 if ("v7" in kind or "tpu7" in kind) else 1


def _kernel(x_ref, w1_ref, b1_ref, w2_ref, b2_ref, o_ref):
    # Layer 1: a single fused-concat matmul (K = sum of all input feature
    # dims), f32 accumulation on the MXU; bias + ReLU in f32 on the VPU.
    h = jnp.dot(x_ref[...], w1_ref[...], preferred_element_type=jnp.float32)
    h = jnp.maximum(h + b1_ref[...], 0.0)
    # Layer 2: hidden is lane-padded to 128 (padded columns are exactly zero,
    # so they do not contribute).  The output is stored at its UNPADDED width:
    # a masked store, but 8x fewer HBM writeback bytes than a 128-padded
    # f32 store — this stream dominates traffic for these tiny dims.
    y = jnp.dot(h.astype(w2_ref.dtype), w2_ref[...],
                preferred_element_type=jnp.float32)
    o_ref[...] = jnp.maximum(y + b2_ref[...], 0.0).astype(o_ref.dtype)


def prepare_params(params, types, edge_weights, *, compute_dtype=jnp.bfloat16):
    """Build kernel-ready (concatenated / padded / cast) weights ONCE per
    parameter set.  Hoist this out of the per-call path (or keep it under the
    same jit so it constant-folds)."""
    weight_per_type = params["weight_per_type"]      # list of (hidden, in_features[t])
    node_w = params["node_self_loop_weight"]         # (hidden, in_features[0])
    bias = params["bias"]                            # (hidden,)
    w_out = params["linear_to_out_weight"]           # (out_features, hidden)
    b_out = params["linear_to_out_bias"]             # (out_features,)

    n_edges = len(edge_weights)
    hidden = node_w.shape[0]
    out_features = w_out.shape[0]
    hidden_p = _round_up(hidden, 128)                # lane-dense intermediate H

    # One concatenated layer-1 weight -> the kernel does a single K~sum_d dot
    # instead of n_inputs tiny (K=4..6) dots.
    w1_slices = [(edge_weights[i] / n_edges) * weight_per_type[t].T
                 for i, t in enumerate(types)]
    w1_slices.append(node_w.T)
    w1 = jnp.concatenate([w.astype(jnp.float32) for w in w1_slices], axis=0)
    w1 = jnp.pad(w1, ((0, 0), (0, hidden_p - hidden))).astype(compute_dtype)

    b1 = jnp.pad(bias.astype(jnp.float32), (0, hidden_p - hidden)).reshape(1, hidden_p)
    w2 = jnp.pad(w_out.T.astype(jnp.float32),
                 ((0, hidden_p - hidden), (0, 0))).astype(compute_dtype)
    b2 = b_out.astype(jnp.float32).reshape(1, out_features)

    feat_dims = [int(weight_per_type[t].shape[1]) for t in types] + [int(node_w.shape[1])]
    return {
        "w1": w1, "b1": b1, "w2": w2, "b2": b2,
        "feat_dims": feat_dims,
        "hidden_p": hidden_p,
        "out_features": out_features,
        "compute_dtype": compute_dtype,
    }


def _choose_tile_m(m, requested, *, sum_d, hidden_p, out_features, itemsize,
                   n_cores, vmem_budget_bytes=12 << 20):
    """Pick the row tile.  Costs use lane-padded widths (a (tm, 22) block
    still occupies 128 lanes per row in VMEM) and include the f32
    intermediates and the resident weight buffers."""
    if m <= 256:
        return m                                   # single full-extent block
    in_row = _round_up(sum_d, 128) * itemsize      # streamed X, lane padded
    out_row = _round_up(out_features, 128) * 4     # streamed f32 out, lane padded
    inter_row = 2 * hidden_p * 4                   # f32 acc + relu intermediate
    per_row = 2 * (in_row + out_row) + inter_row   # streams are double-buffered
    resident = ((sum_d * hidden_p + hidden_p * _round_up(out_features, 128)) * itemsize
                + (hidden_p + _round_up(out_features, 128)) * 4)
    budget = max(vmem_budget_bytes - resident, 1 << 20)

    t = max(256, (min(int(requested), 2048) // 256) * 256)  # multiple of 256
    while t > 256 and t * per_row > budget:
        t //= 2
    # Only force >= n_cores grid steps on multi-TensorCore parts (v7x); on
    # single-TC v5e/v6e an extra split just adds a pipeline step.
    while t > 256 and pl.cdiv(m, t) < n_cores:
        t //= 2
    return t


def graph_multi_type_attention(inputs, types, edge_weights, params, *,
                               tile_m=1024, compute_dtype=jnp.bfloat16,
                               prepared=None):
    """JAX/Pallas equivalent of GraphMultiTypeAttention.forward."""
    if prepared is None:
        prepared = prepare_params(params, types, edge_weights,
                                  compute_dtype=compute_dtype)
    w1, b1, w2, b2 = prepared["w1"], prepared["b1"], prepared["w2"], prepared["b2"]
    feat_dims = prepared["feat_dims"]
    hidden_p = prepared["hidden_p"]
    out_features = prepared["out_features"]
    compute_dtype = prepared["compute_dtype"]
    itemsize = jnp.dtype(compute_dtype).itemsize

    assert len(inputs) == len(feat_dims), "one input per edge + self loop expected"
    lead_shape = inputs[0].shape[:-1]
    m = 1
    for s in lead_shape:
        m *= int(s)
    sum_d = sum(feat_dims)

    # Fused concat on the (tiny, ~sum_d*itemsize B/row) input side; XLA fuses
    # this with the reshape/astype.  No row padding: the grid uses pl.cdiv and
    # Pallas masks the partial edge block (rows are independent).
    x2d = jnp.concatenate(
        [x.reshape(m, d).astype(compute_dtype) for x, d in zip(inputs, feat_dims)],
        axis=-1)

    tm = _choose_tile_m(m, tile_m, sum_d=sum_d, hidden_p=hidden_p,
                        out_features=out_features, itemsize=itemsize,
                        n_cores=_num_tensorcores())
    grid = (pl.cdiv(m, tm),)

    cost = pl.CostEstimate(
        flops=2 * m * (sum_d * hidden_p + hidden_p * out_features),
        transcendentals=0,
        bytes_accessed=(m * sum_d * itemsize + m * out_features * 4
                        + w1.size * itemsize + w2.size * itemsize
                        + b1.size * 4 + b2.size * 4),
    )

    out2d = pl.pallas_call(
        _kernel,
        out_shape=jax.ShapeDtypeStruct((m, out_features), jnp.float32),
        grid=grid,
        in_specs=[
            # Streamed, fused-concat activation block.
            pl.BlockSpec((tm, sum_d), lambda i: (i, 0)),
            # Constant index_maps -> Pallas keeps these tiny weights resident
            # in VMEM across grid steps instead of re-DMA'ing per step.
            pl.BlockSpec(w1.shape, lambda i: (0, 0)),
            pl.BlockSpec(b1.shape, lambda i: (0, 0)),
            pl.BlockSpec(w2.shape, lambda i: (0, 0)),
            pl.BlockSpec(b2.shape, lambda i: (0, 0)),
        ],
        # Unpadded output width: no wrapper-side slice / extra HBM pass.
        out_specs=pl.BlockSpec((tm, out_features), lambda i: (i, 0)),
        compiler_params=pltpu.CompilerParams(
            dimension_semantics=("parallel",),
            vmem_limit_bytes=32 << 20),
        cost_estimate=cost,
    )(x2d, w1, b1, w2, b2)

    return out2d.reshape(*lead_shape, out_features)


def init_params(key, in_features, hidden_features, out_features, types):
    """Deterministic init mirroring reset_parameters() / nn.Linear defaults."""
    keys = jax.random.split(key, types + 4)
    weight_per_type = []
    for i in range(types):
        bound = 1.0 / math.sqrt(in_features[i])
        weight_per_type.append(
            jax.random.uniform(keys[i], (hidden_features, in_features[i]),
                               minval=-bound, maxval=bound, dtype=jnp.float32))
    bound0 = 1.0 / math.sqrt(in_features[0])
    node_w = jax.random.uniform(keys[types], (hidden_features, in_features[0]),
                                minval=-bound0, maxval=bound0, dtype=jnp.float32)
    bias = jax.random.uniform(keys[types + 1], (hidden_features,),
                              minval=-bound0, maxval=bound0, dtype=jnp.float32)
    bound_l = 1.0 / math.sqrt(hidden_features)
    w_out = jax.random.uniform(keys[types + 2], (out_features, hidden_features),
                               minval=-bound_l, maxval=bound_l, dtype=jnp.float32)
    b_out = jax.random.uniform(keys[types + 3], (out_features,),
                               minval=-bound_l, maxval=bound_l, dtype=jnp.float32)
    return {
        "weight_per_type": weight_per_type,
        "node_self_loop_weight": node_w,
        "bias": bias,
        "linear_to_out_weight": w_out,
        "linear_to_out_bias": b_out,
    }


def _reference(inputs, types, edge_weights, params):
    """Pure-JAX reference matching the PyTorch forward exactly (f32)."""
    n = len(edge_weights)
    wl = [(edge_weights[i] / n) * params["weight_per_type"][t].T
          for i, t in enumerate(types)]
    wl.append(params["node_self_loop_weight"].T)
    w = jnp.concatenate(wl, axis=0)
    x = jnp.concatenate(inputs, axis=-1)
    out = x @ w + params["bias"]
    h = jnp.maximum(out, 0.0)
    y = h @ params["linear_to_out_weight"].T + params["linear_to_out_bias"]
    return jnp.maximum(y, 0.0)


if __name__ == "__main__":
    key = jax.random.PRNGKey(0)

    # Module config: 2 node types, 3 edges (types [0, 1, 0]) plus the self-loop input.
    in_features = [6, 4]
    hidden_features = 32
    out_features = 16
    n_types = 2
    types = [0, 1, 0]
    edge_weights = [1.0, 0.5, 2.0]
    batch, nodes = 2, 8

    pkey, ikey = jax.random.split(key)
    params = init_params(pkey, in_features, hidden_features, out_features, n_types)

    # One input per edge (feature dim = in_features[type]) + the node's own state.
    feat_dims = [in_features[t] for t in types] + [in_features[0]]
    ikeys = jax.random.split(ikey, len(feat_dims))
    inputs = [
        jax.random.normal(ikeys[i], (batch, nodes, d), dtype=jnp.float32)
        for i, d in enumerate(feat_dims)
    ]

    ref = _reference(inputs, types, edge_weights, params)

    # f32 path: tight check against the pure-JAX reference.
    prepared_f32 = prepare_params(params, types, edge_weights,
                                  compute_dtype=jnp.float32)
    out_f32 = graph_multi_type_attention(inputs, types, edge_weights, params,
                                         prepared=prepared_f32)
    out_f32 = jax.block_until_ready(out_f32)
    assert out_f32.shape == (batch, nodes, out_features), out_f32.shape
    assert jnp.allclose(out_f32, ref, atol=1e-4, rtol=1e-4), "f32 mismatch vs reference"

    # Default bf16 MXU path (f32 accumulation): prepared weights hoisted out
    # of the per-call path; looser tolerance vs the f32 reference.
    prepared_bf16 = prepare_params(params, types, edge_weights,
                                   compute_dtype=jnp.bfloat16)
    out_bf16 = graph_multi_type_attention(inputs, types, edge_weights, params,
                                          prepared=prepared_bf16)
    out_bf16 = jax.block_until_ready(out_bf16)
    assert out_bf16.shape == (batch, nodes, out_features), out_bf16.shape
    assert jnp.allclose(out_bf16, ref, atol=1e-1, rtol=1e-1), "bf16 mismatch vs reference"

    print("KERNEL_OK")
</pallas_src>

<mosaic_0001>
module attributes {stable_mosaic.version = 11 : i64} {
  func.func @_kernel(%arg0: i32, %arg1: memref<16x22xf32, #tpu.memory_space<vmem>>, %arg2: memref<22x128xf32, #tpu.memory_space<vmem>>, %arg3: memref<1x128xf32, #tpu.memory_space<vmem>>, %arg4: memref<128x16xf32, #tpu.memory_space<vmem>>, %arg5: memref<1x16xf32, #tpu.memory_space<vmem>>, %arg6: memref<16x16xf32, #tpu.memory_space<vmem>>) attributes {dimension_semantics = [#tpu.dimension_semantics<parallel>], iteration_bounds = array<i64: 1>, scalar_prefetch = 0 : i64, scratch_operands = 0 : i64, tpu.core_type = #tpu.core_type<tc>, window_params = [{transform_indices = @transform_0, window_bounds = array<i64: 16, 22>}, {pipeline_mode = #tpu.pipeline_mode<synchronous>, transform_indices = @transform_1, window_bounds = array<i64: 22, 128>}, {pipeline_mode = #tpu.pipeline_mode<synchronous>, transform_indices = @transform_2, window_bounds = array<i64: 1, 128>}, {pipeline_mode = #tpu.pipeline_mode<synchronous>, transform_indices = @transform_3, window_bounds = array<i64: 128, 16>}, {pipeline_mode = #tpu.pipeline_mode<synchronous>, transform_indices = @transform_4, window_bounds = array<i64: 1, 16>}, {transform_indices = @transform_5, window_bounds = array<i64: 16, 16>}]} {
    %c0 = arith.constant 0 : index
    %c0_0 = arith.constant 0 : index
    %0 = vector.load %arg1[%c0, %c0_0] : memref<16x22xf32, #tpu.memory_space<vmem>>, vector<16x22xf32>
    %c0_1 = arith.constant 0 : index
    %c0_2 = arith.constant 0 : index
    %1 = vector.load %arg2[%c0_1, %c0_2] : memref<22x128xf32, #tpu.memory_space<vmem>>, vector<22x128xf32>
    %cst = arith.constant dense<0.000000e+00> : vector<16x128xf32>
    %2 = tpu.matmul %0, %1, %cst {dimension_numbers = #tpu.dot_dimension_numbers<[1], [0], [0], [1], [0, 0, 1, 1], [], []>} : vector<16x22xf32>, vector<22x128xf32>, vector<16x128xf32> -> vector<16x128xf32>
    %c0_3 = arith.constant 0 : index
    %c0_4 = arith.constant 0 : index
    %3 = vector.load %arg3[%c0_3, %c0_4] : memref<1x128xf32, #tpu.memory_space<vmem>>, vector<1x128xf32>
    %4 = vector.broadcast %3 : vector<1x128xf32> to vector<16x128xf32>
    %5 = arith.addf %2, %4 : vector<16x128xf32>
    %cst_5 = arith.constant 0.000000e+00 : f32
    %6 = vector.broadcast %cst_5 : f32 to vector<16x128xf32>
    %7 = arith.maximumf %5, %6 : vector<16x128xf32>
    %c0_6 = arith.constant 0 : index
    %c0_7 = arith.constant 0 : index
    %8 = vector.load %arg4[%c0_6, %c0_7] : memref<128x16xf32, #tpu.memory_space<vmem>>, vector<128x16xf32>
    %cst_8 = arith.constant dense<0.000000e+00> : vector<16x16xf32>
    %9 = tpu.matmul %7, %8, %cst_8 {dimension_numbers = #tpu.dot_dimension_numbers<[1], [0], [0], [1], [0, 0, 1, 1], [], []>} : vector<16x128xf32>, vector<128x16xf32>, vector<16x16xf32> -> vector<16x16xf32>
    %c0_9 = arith.constant 0 : index
    %c0_10 = arith.constant 0 : index
    %10 = vector.load %arg5[%c0_9, %c0_10] : memref<1x16xf32, #tpu.memory_space<vmem>>, vector<1x16xf32>
    %11 = vector.broadcast %10 : vector<1x16xf32> to vector<16x16xf32>
    %12 = arith.addf %9, %11 : vector<16x16xf32>
    %cst_11 = arith.constant 0.000000e+00 : f32
    %13 = vector.broadcast %cst_11 : f32 to vector<16x16xf32>
    %14 = arith.maximumf %12, %13 : vector<16x16xf32>
    %c0_12 = arith.constant 0 : index
    %c0_13 = arith.constant 0 : index
    %15 = vector.load %arg6[%c0_12, %c0_13] : memref<16x16xf32, #tpu.memory_space<vmem>>, vector<16x16xf32>
    tpu.vector_store %arg6[%c0_12, %c0_13], %14 {strides = array<i32>} : memref<16x16xf32, #tpu.memory_space<vmem>>, vector<16x16xf32>,
    return
  }
  func.func @transform_0(%arg0: i32) -> (i32, i32) {
    %c0_i32 = arith.constant 0 : i32
    %c0_i32_0 = arith.constant 0 : i32
    return %arg0, %c0_i32 : i32, i32
  }
  func.func @transform_1(%arg0: i32) -> (i32, i32) {
    %c0_i32 = arith.constant 0 : i32
    %c0_i32_0 = arith.constant 0 : i32
    %c0_i32_1 = arith.constant 0 : i32
    return %c0_i32, %c0_i32_0 : i32, i32
  }
  func.func @transform_2(%arg0: i32) -> (i32, i32) {
    %c0_i32 = arith.constant 0 : i32
    %c0_i32_0 = arith.constant 0 : i32
    %c0_i32_1 = arith.constant 0 : i32
    return %c0_i32, %c0_i32_0 : i32, i32
  }
  func.func @transform_3(%arg0: i32) -> (i32, i32) {
    %c0_i32 = arith.constant 0 : i32
    %c0_i32_0 = arith.constant 0 : i32
    %c0_i32_1 = arith.constant 0 : i32
    return %c0_i32, %c0_i32_0 : i32, i32
  }
  func.func @transform_4(%arg0: i32) -> (i32, i32) {
    %c0_i32 = arith.constant 0 : i32
    %c0_i32_0 = arith.constant 0 : i32
    %c0_i32_1 = arith.constant 0 : i32
    return %c0_i32, %c0_i32_0 : i32, i32
  }
  func.func @transform_5(%arg0: i32) -> (i32, i32) {
    %c0_i32 = arith.constant 0 : i32
    %c0_i32_0 = arith.constant 0 : i32
    return %arg0, %c0_i32 : i32, i32
  }
}

</mosaic_0001>

<llo_original>
// kernel: tpu_custom_call.1
$region0: #{tpu_custom_call.1}
  #allocation0 [shape = 'u32[]', space=smem, size = 0x4, offset = 0x4, fixed_abs, tag = 'smem constant byte address 0x4 - core index']
  #allocation1 [shape = 'u32[144,128]{1,0:T(1,128)}', space=vmem, size = 0x12000, scoped, tag = 'internal scratch']
  %s0 = inlined_call_operand.vmem [shape: f32[16,22], index: 0, kind: input, shape index: {}]
  %s1 = inlined_call_operand.vmem [shape: f32[22,128], index: 1, kind: input, shape index: {}]
  %s2 = inlined_call_operand.vmem [shape: f32[1,128], index: 2, kind: input, shape index: {}]
  %s3 = inlined_call_operand.vmem [shape: f32[128,16], index: 3, kind: input, shape index: {}]
  %s4 = inlined_call_operand.vmem [shape: f32[1,16], index: 4, kind: input, shape index: {}]
  %s5 = inlined_call_operand.hbm [shape: f32[16,16], index: 5, kind: output, shape index: {}]
  %s6 = sld [smem:[#allocation0]]
  $region30: #{tpu_custom_call.1} parent=0
    _
  %s8 = ssub.s32 1, %s6
  %s9 = scalar_select 0, %s8, %s6
  $region1: #{tpu_custom_call.1} parent=0
    #allocation2 [shape = 'u8[8192]{0}', space=vmem, size = 0x2000, scoped, tag = 'output window, operand 0, single buffered']
    #allocation3 [shape = 's32[1]{0}', space=sflag, size = 0x4, scoped, tag = 'scoped memory for tpu_custom_call.1']
    %10 = vsyncpa [#allocation3], 0
    // Predicated region
    $region2: #{tpu_custom_call.1} parent=1 // pred_check
      _
    $region3: #{tpu_custom_call.1} parent=1 // pred_check_branch
      %12 = sbr.rel (0) target = $region5
    $region4: #{tpu_custom_call.1} parent=1 // pred_region
      _
    $region5: #{tpu_custom_call.1} parent=1 // pred_fallthru
      _
    // Predicated region
    $region6: #{tpu_custom_call.1} parent=1 // pred_check
      _
    $region7: #{tpu_custom_call.1} parent=1 // pred_check_branch
      %14 = sbr.rel (0) target = $region9
    $region8: #{tpu_custom_call.1} parent=1 // pred_region
      _
    $region9: #{tpu_custom_call.1} parent=1 // pred_fallthru
      _
    // Predicated region
    $region10: #{tpu_custom_call.1} parent=1 // pred_check
      _
    $region11: #{tpu_custom_call.1} parent=1 // pred_check_branch
      %16 = sbr.rel (0) target = $region13
    $region12: #{tpu_custom_call.1} parent=1 // pred_region
      _
    $region13: #{tpu_custom_call.1} parent=1 // pred_fallthru
      _
    // Predicated region
    $region14: #{tpu_custom_call.1} parent=1 // pred_check
      _
    $region15: #{tpu_custom_call.1} parent=1 // pred_check_branch
      %18 = sbr.rel (0) target = $region17
    $region16: #{tpu_custom_call.1} parent=1 // pred_region
      _
    $region17: #{tpu_custom_call.1} parent=1 // pred_fallthru
      _
    // Predicated region
    $region18: #{tpu_custom_call.1} parent=1 // pred_check
      _
    $region19: #{tpu_custom_call.1} parent=1 // pred_check_branch
      %20 = sbr.rel (0) target = $region21
    $region20: #{tpu_custom_call.1} parent=1 // pred_region
      _
    $region21: #{tpu_custom_call.1} parent=1 // pred_fallthru
      _
    %v21 = vld [vmem:[%s0] sm:$0xff]
    %v22 = vld [vmem:[%s0 + $0x8] sm:$0xff]
    %v23 = vld [vmem:[%s1] sm:$0xff]
    %v24 = vld [vmem:[%s1 + $0x8] sm:$0xff]
    %v25 = vld [vmem:[%s1 + $0x10] sm:$0x3f]
    %v26 = vld [vmem:[%s2] sm:$0x1]
    %v28 = vlaneseq
    %v29 = vshrl.u32 %v28, 7
    %v30 = vsub.s32 0, %v29
    %v31 = vrot.slane %v26, %v30
    %vm33 = vcmask 179200
    %v35 = vsel %vm33, %v21, 0
    %v38 = vsel %vm33, %v22, 0
    %vm40 = vcmask 1045504
    %v42 = vsel %vm40, %v25, 0
    %44 = vmatprep.subr.mxu0 0.0
    %45 = vmatpush1.msra.mxu0 %v23
    %46 = vmatprep.subr.mxu0 0.0
    %47 = vmatpush1.msra.mxu0 %v24
    %48 = vmatprep.subr.mxu0 0.0
    %49 = vmatpush1.msra.mxu0 %v42
    %50 = vmatprep.subr.mxu0 0.0
    %51 = vmatpush1.msra.mxu0 0.0
    %52 = vmatprep.subr.mxu0 0.0
    %53 = vmatpush1.msra.mxu0 0.0
    %54 = vmatprep.subr.mxu0 0.0
    %55 = vmatpush1.msra.mxu0 0.0
    %56 = vmatprep.subr.mxu0 0.0
    %57 = vmatpush1.msra.mxu0 0.0
    %58 = vmatprep.subr.mxu0 0.0
    %59 = vmatpush1.msra.mxu0 0.0
    %60 = vmatprep.subr.mxu0 0.0
    %61 = vmatpush1.msra.mxu0 0.0
    %62 = vmatprep.subr.mxu0 0.0
    %63 = vmatpush1.msra.mxu0 0.0
    %64 = vmatprep.subr.mxu0 0.0
    %65 = vmatpush1.msra.mxu0 0.0
    %66 = vmatprep.subr.mxu0 0.0
    %67 = vmatpush1.msra.mxu0 0.0
    %68 = vmatprep.subr.mxu0 0.0
    %69 = vmatpush1.msra.mxu0 0.0
    %70 = vmatprep.subr.mxu0 0.0
    %71 = vmatpush1.msra.mxu0 0.0
    %72 = vmatprep.subr.mxu0 0.0
    %73 = vmatpush1.msra.mxu0 0.0
    %74 = vmatprep.subr.mxu0 0.0
    %75 = vmatpush1.msra.mxu0 0.0
    %76 = vmatprep.subr.mxu0 0.0
    %77 = vmatpush1.msra.mxu0 0.0
    %78 = vmatprep.subr.mxu0 0.0
    %79 = vmatpush1.msra.mxu0 0.0
    %80 = vmatprep.subr.mxu0 0.0
    %81 = vmatpush1.msra.mxu0 0.0
    %82 = vmatprep.subr.mxu0 0.0
    %83 = vmatpush1.msra.mxu0 0.0
    %84 = vmatprep.subr.mxu0 0.0
    %85 = vmatpush1.msra.mxu0 0.0
    %86 = vmatprep.subr.mxu0 0.0
    %87 = vmatpush1.msra.mxu0 0.0
    %88 = vmatprep.subr.mxu0 0.0
    %89 = vmatpush1.msra.mxu0 0.0
    %90 = vmatprep.subr.mxu0 0.0
    %91 = vmatpush1.msra.mxu0 0.0
    %92 = vmatprep.subr.mxu0 0.0
    %93 = vmatpush1.msra.mxu0 0.0
    %94 = vmatprep.subr.mxu0 0.0
    %95 = vmatpush1.msra.mxu0 0.0
    %96 = vmatprep.subr.mxu0 0.0
    %97 = vmatpush1.msra.mxu0 0.0
    %98 = vmatprep.subr.mxu0 0.0
    %99 = vmatpush1.msra.mxu0 0.0
    %100 = vmatprep.subr.mxu0 0.0
    %101 = vmatpush1.msra.mxu0 0.0
    %102 = vmatprep.subr.mxu0 0.0
    %103 = vmatpush1.msra.mxu0 0.0
    %104 = vmatprep.subr.mxu0 0.0
    %105 = vmatpush1.msra.mxu0 0.0
    %106 = vmatprep.subr.mxu0 0.0
    %107 = vmatpush1.msra.mxu0 0.0
    %108 = vmatprep.mubr.f32.mxu0 0.0
    %109 = vmatmul.mubr.f32.gmra.mrb[0].mxu0 %v35
    %v110 = vpop.f32.mrb[0].mxu0
    %v111 = vadd.f32 %v31, %v110
    %v112 = vpop.f32.mrb[0].mxu0
    %113 = vmatprep.mubr.f32.mxu0 0.0
    %114 = vmatmul.mubr.f32.gmra.mrb[0].mxu0 %v38
    %v115 = vpop.f32.mrb[0].mxu0
    %v116 = vadd.f32 %v31, %v115
    %v117 = vpop.f32.mrb[0].mxu0
    %118 = vdwg.mxu0
    %v119 = vmax.f32 %v111, 0.0
    %v120 = vmax.f32 %v116, 0.0
    %v121 = vld [vmem:[%s3] sm:$0xff]
    %v122 = vld [vmem:[%s3 + $0x8] sm:$0xff]
    %v123 = vld [vmem:[%s3 + $0x10] sm:$0xff]
    %v124 = vld [vmem:[%s3 + $0x18] sm:$0xff]
    %v125 = vld [vmem:[%s3 + $0x20] sm:$0xff]
    %v126 = vld [vmem:[%s3 + $0x28] sm:$0xff]
    %v127 = vld [vmem:[%s3 + $0x30] sm:$0xff]
    %v128 = vld [vmem:[%s3 + $0x38] sm:$0xff]
    %v129 = vld [vmem:[%s3 + $0x40] sm:$0xff]
    %v130 = vld [vmem:[%s3 + $0x48] sm:$0xff]
    %v131 = vld [vmem:[%s3 + $0x50] sm:$0xff]
    %v132 = vld [vmem:[%s3 + $0x58] sm:$0xff]
    %v133 = vld [vmem:[%s3 + $0x60] sm:$0xff]
    %v134 = vld [vmem:[%s3 + $0x68] sm:$0xff]
    %v135 = vld [vmem:[%s3 + $0x70] sm:$0xff]
    %v136 = vld [vmem:[%s3 + $0x78] sm:$0xff]
    %v137 = vld [vmem:[%s4] sm:$0x1]
    %v139 = vlaneseq
    %v140 = vshrl.u32 %v139, 7
    %v141 = vsub.s32 0, %v140
    %v142 = vrot.slane %v137, %v141
    %144 = vmatprep.subr.mxu0 0.0
    %145 = vmatpush1.msra.mxu0 %v121
    %146 = vmatprep.subr.mxu0 0.0
    %147 = vmatpush1.msra.mxu0 %v122
    %148 = vmatprep.subr.mxu0 0.0
    %149 = vmatpush1.msra.mxu0 %v123
    %150 = vmatprep.subr.mxu0 0.0
    %151 = vmatpush1.msra.mxu0 %v124
    %152 = vmatprep.subr.mxu0 0.0
    %153 = vmatpush1.msra.mxu0 %v125
    %154 = vmatprep.subr.mxu0 0.0
    %155 = vmatpush1.msra.mxu0 %v126
    %156 = vmatprep.subr.mxu0 0.0
    %157 = vmatpush1.msra.mxu0 %v127
    %158 = vmatprep.subr.mxu0 0.0
    %159 = vmatpush1.msra.mxu0 %v128
    %160 = vmatprep.subr.mxu0 0.0
    %161 = vmatpush1.msra.mxu0 %v129
    %162 = vmatprep.subr.mxu0 0.0
    %163 = vmatpush1.msra.mxu0 %v130
    %164 = vmatprep.subr.mxu0 0.0
    %165 = vmatpush1.msra.mxu0 %v131
    %166 = vmatprep.subr.mxu0 0.0
    %167 = vmatpush1.msra.mxu0 %v132
    %168 = vmatprep.subr.mxu0 0.0
    %169 = vmatpush1.msra.mxu0 %v133
    %170 = vmatprep.subr.mxu0 0.0
    %171 = vmatpush1.msra.mxu0 %v134
    %172 = vmatprep.subr.mxu0 0.0
    %173 = vmatpush1.msra.mxu0 %v135
    %174 = vmatprep.subr.mxu0 0.0
    %175 = vmatpush1.msra.mxu0 %v136
    %176 = vmatprep.subr.mxu0 0.0
    %177 = vmatpush1.msra.mxu0 0.0
    %178 = vmatprep.subr.mxu0 0.0
    %179 = vmatpush1.msra.mxu0 0.0
    %180 = vmatprep.subr.mxu0 0.0
    %181 = vmatpush1.msra.mxu0 0.0
    %182 = vmatprep.subr.mxu0 0.0
    %183 = vmatpush1.msra.mxu0 0.0
    %184 = vmatprep.subr.mxu0 0.0
    %185 = vmatpush1.msra.mxu0 0.0
    %186 = vmatprep.subr.mxu0 0.0
    %187 = vmatpush1.msra.mxu0 0.0
    %188 = vmatprep.subr.mxu0 0.0
    %189 = vmatpush1.msra.mxu0 0.0
    %190 = vmatprep.subr.mxu0 0.0
    %191 = vmatpush1.msra.mxu0 0.0
    %192 = vmatprep.subr.mxu0 0.0
    %193 = vmatpush1.msra.mxu0 0.0
    %194 = vmatprep.subr.mxu0 0.0
    %195 = vmatpush1.msra.mxu0 0.0
    %196 = vmatprep.subr.mxu0 0.0
    %197 = vmatpush1.msra.mxu0 0.0
    %198 = vmatprep.subr.mxu0 0.0
    %199 = vmatpush1.msra.mxu0 0.0
    %200 = vmatprep.subr.mxu0 0.0
    %201 = vmatpush1.msra.mxu0 0.0
    %202 = vmatprep.subr.mxu0 0.0
    %203 = vmatpush1.msra.mxu0 0.0
    %204 = vmatprep.subr.mxu0 0.0
    %205 = vmatpush1.msra.mxu0 0.0
    %206 = vmatprep.subr.mxu0 0.0
    %207 = vmatpush1.msra.mxu0 0.0
    %208 = vmatprep.mubr.f32.mxu0 0.0
    %209 = vmatmul.mubr.f32.gmra.mrb[0].mxu0 %v119
    %v210 = vpop.f32.mrb[0].mxu0
    %v211 = vadd.f32 %v142, %v210
    %v212 = vpop.f32.mrb[0].mxu0
    %213 = vmatprep.mubr.f32.mxu0 0.0
    %214 = vmatmul.mubr.f32.gmra.mrb[0].mxu0 %v120
    %v215 = vpop.f32.mrb[0].mxu0
    %v216 = vadd.f32 %v142, %v215
    %v217 = vpop.f32.mrb[0].mxu0
    %218 = vdwg.mxu0
    %v219 = vmax.f32 %v211, 0.0
    %v220 = vmax.f32 %v216, 0.0
    %vm221 = vcmask 130048
    %222 = vst.msk [vmem:[#allocation2] sm:$0xff] %vm221, %v219
    %223 = vst.msk [vmem:[#allocation2 + $0x8] sm:$0xff] %vm221, %v220
    // Predicated region
    $region22: #{tpu_custom_call.1} parent=1 // pred_check
      _
    $region23: #{tpu_custom_call.1} parent=1 // pred_check_branch
      %225 = sbr.rel (0) target = $region25
    $region24: #{tpu_custom_call.1} parent=1 // pred_region
      %s227 = ssub.s32 256, 256
      %228 = vsyncadd [#allocation3], %s227
      %s229 = sshll.u32 [#allocation2], 4
      %s230 = int_to_ptr.vmem [resolvable:$true] %s229
      %235 = dma.vmem_to_hbm [thread:$0]  %s230, 256, %s5, [#allocation3], 128, 128, 8
    $region25: #{tpu_custom_call.1} parent=1 // pred_fallthru
      _
    // Predicated region
    $region26: #{tpu_custom_call.1} parent=1 // pred_check
      _
    $region27: #{tpu_custom_call.1} parent=1 // pred_check_branch
      %237 = sbr.rel (0) target = $region29
    $region28: #{tpu_custom_call.1} parent=1 // pred_region
      %238 = dma.done [#allocation3], 256
    $region29: #{tpu_custom_call.1} parent=1 // pred_fallthru
      _
    %239 = vsyncpa [#allocation3], 1

</llo_original>
